<compile_context>
chip_gen: v5e
topology: v5e:2x2
jax: 0.10.0
libtpu: 0.0.40
codegen_flags: <defaults>
</compile_context>

<pallas_src>
import functools

import jax
import jax.numpy as jnp
from jax import lax
from jax.experimental import pallas as pl
from jax.experimental.pallas import tpu as pltpu


LANE = 128
NEG_INF = -1e30          # mask value for lane-padding columns

_CPARAMS = pltpu.CompilerParams(
    dimension_semantics=("parallel",),      # shard batch grid across TCs (v7x)
    vmem_limit_bytes=32 * 1024 * 1024,      # headroom for block_b up to ~1024
)


def _round_up(x, m):
    return (x + m - 1) // m * m


def _batch_tile(B, target):
    # Balanced batch tiles, multiple of 8 (sublane rule), and at least 2 grid
    # steps whenever B allows it so v7x's second TensorCore isn't idle.
    n_tiles = max(2, pl.cdiv(B, target))
    return _round_up(pl.cdiv(B, n_tiles), 8)


def _pad_rows(w, rows):
    pad = rows - w.shape[0]
    return jnp.pad(w, ((0, pad), (0, 0))) if pad else w


def _pad_cols(v, cols):
    pad = cols - v.shape[-1]
    return jnp.pad(v, ((0, 0), (0, pad))) if pad else v


def _proto_col_inv(prototypes, Cp):
    # Per-prototype inverse L2 norm.  Computed from the bf16-rounded
    # prototypes so it matches the bf16 MXU operand.  Zero-guard covers the
    # zero-padded rows (and all-zero prototypes).
    p = prototypes.astype(jnp.bfloat16).astype(jnp.float32)
    sumsq = jnp.sum(p * p, axis=1)
    inv = jnp.where(sumsq > 0, lax.rsqrt(sumsq), 0.0)
    return _pad_cols(inv[None, :], Cp)                    # [1, Cp] f32


# ----------------------------------------------------------------------------
# One-time parameter prep (hoisted out of the per-call path).
# ----------------------------------------------------------------------------
def prep_forward(w_fc):
    C, _ = w_fc.shape
    Cp = _round_up(C, LANE)
    return {"w": _pad_rows(w_fc, Cp).astype(jnp.bfloat16), "C": C}


def prep_mem(prototypes):
    C, _ = prototypes.shape
    Cp = _round_up(C, LANE)
    return {"protos": _pad_rows(prototypes, Cp).astype(jnp.bfloat16),
            "col_inv": _proto_col_inv(prototypes, Cp),
            "C": C}


def prep_fused(w_fc, prototypes):
    C, _ = w_fc.shape
    Cp = _round_up(C, LANE)
    w_cat = jnp.concatenate(
        [_pad_rows(w_fc, Cp), _pad_rows(prototypes, Cp)], axis=0
    ).astype(jnp.bfloat16)                                # [2*Cp, H] resident
    return {"w_cat": w_cat,
            "col_inv": _proto_col_inv(prototypes, Cp),
            "C": C, "Cp": Cp}


def prep_contrastive(w1, b1, w2, b2):
    Hout, _ = w2.shape
    Hp = _round_up(Hout, LANE)
    return {"w1": w1.astype(jnp.bfloat16),
            "b1": jnp.reshape(b1, (1, -1)).astype(jnp.float32),
            "w2": _pad_rows(w2, Hp).astype(jnp.bfloat16),
            "b2": _pad_cols(jnp.reshape(b2, (1, -1)).astype(jnp.float32), Hp),
            "Hout": Hout}


# ----------------------------------------------------------------------------
# Kernel 1: forward — logits = dropout(rep) @ W_fc^T   (dropout = identity)
# ----------------------------------------------------------------------------
def _forward_kernel(rep_ref, w_ref, logits_ref, *, n_valid):
    s = lax.dot_general(
        rep_ref[...], w_ref[...],                         # bf16 x bf16, f32 acc
        dimension_numbers=(((1,), (1,)), ((), ())),
        preferred_element_type=jnp.float32)               # [TB, Cp]
    cols = lax.broadcasted_iota(jnp.int32, s.shape, 1)
    logits_ref[...] = jnp.where(cols < n_valid, s, NEG_INF).astype(logits_ref.dtype)


def forward(rep, params, *, block_b=512, out_dtype=jnp.float32):
    """rep: [B, H] bf16.  Returns (logits_padded [B, Cp], rep).

    Padded logit columns (>= params['C']) are masked to NEG_INF so a
    downstream softmax/argmax over the padded array is unaffected."""
    B, H = rep.shape
    w, C = params["w"], params["C"]
    Cp = w.shape[0]
    tb = _batch_tile(B, block_b)
    logits_p = pl.pallas_call(
        functools.partial(_forward_kernel, n_valid=C),
        out_shape=jax.ShapeDtypeStruct((B, Cp), out_dtype),
        grid=(pl.cdiv(B, tb),),
        in_specs=[
            pl.BlockSpec((tb, H), lambda i: (i, 0)),      # batch-tiled rep
            pl.BlockSpec((Cp, H), lambda i: (0, 0)),      # weight resident
        ],
        out_specs=pl.BlockSpec((tb, Cp), lambda i: (i, 0)),
        compiler_params=_CPARAMS,
    )(rep, w)
    return logits_p, rep                                  # matches (logits, rep)


# ----------------------------------------------------------------------------
# Kernel 2: mem_forward — cosine distance rep vs prototypes.
# Matmul on raw bf16 inputs, then scale the [B,C] OUTPUT by the row/col
# inverse norms (f32 on the VPU/EUP).
# ----------------------------------------------------------------------------
def _mem_kernel(rep_ref, proto_ref, colinv_ref, dis_ref, *, n_valid):
    rep = rep_ref[...]                                    # [TB, H] bf16
    s = lax.dot_general(
        rep, proto_ref[...],
        dimension_numbers=(((1,), (1,)), ((), ())),
        preferred_element_type=jnp.float32)               # [TB, Cp]
    repf = rep.astype(jnp.float32)
    ss = jnp.sum(repf * repf, axis=1, keepdims=True)
    inv_r = jnp.where(ss > 0, lax.rsqrt(ss), 0.0)         # zero-guarded row norm
    d = s * inv_r * colinv_ref[...]
    cols = lax.broadcasted_iota(jnp.int32, d.shape, 1)
    dis_ref[...] = jnp.where(cols < n_valid, d, NEG_INF).astype(dis_ref.dtype)


def mem_forward(rep, params, *, block_b=512, out_dtype=jnp.float32):
    B, H = rep.shape
    protos, col_inv, C = params["protos"], params["col_inv"], params["C"]
    Cp = protos.shape[0]
    tb = _batch_tile(B, block_b)
    return pl.pallas_call(
        functools.partial(_mem_kernel, n_valid=C),
        out_shape=jax.ShapeDtypeStruct((B, Cp), out_dtype),
        grid=(pl.cdiv(B, tb),),
        in_specs=[
            pl.BlockSpec((tb, H), lambda i: (i, 0)),
            pl.BlockSpec((Cp, H), lambda i: (0, 0)),
            pl.BlockSpec((1, Cp), lambda i: (0, 0)),
        ],
        out_specs=pl.BlockSpec((tb, Cp), lambda i: (i, 0)),
        compiler_params=_CPARAMS,
    )(rep, protos, col_inv)


# ----------------------------------------------------------------------------
# Kernel 3 (fused): logits + cosine distance in ONE launch.
# rep is read from HBM once; one matmul with N = 2*Cp fills the MXU better.
# Use this whenever both outputs are needed.
# ----------------------------------------------------------------------------
def _fused_kernel(rep_ref, wcat_ref, colinv_ref, logits_ref, dis_ref, *, n_valid):
    rep = rep_ref[...]                                    # [TB, H] bf16
    s = lax.dot_general(
        rep, wcat_ref[...],
        dimension_numbers=(((1,), (1,)), ((), ())),
        preferred_element_type=jnp.float32)               # [TB, 2*Cp]
    cp = logits_ref.shape[-1]                             # static, 128-aligned
    lg = s[:, :cp]
    cols = lax.broadcasted_iota(jnp.int32, lg.shape, 1)
    valid = cols < n_valid
    logits_ref[...] = jnp.where(valid, lg, NEG_INF).astype(logits_ref.dtype)
    repf = rep.astype(jnp.float32)
    ss = jnp.sum(repf * repf, axis=1, keepdims=True)
    inv_r = jnp.where(ss > 0, lax.rsqrt(ss), 0.0)
    d = s[:, cp:] * inv_r * colinv_ref[...]
    dis_ref[...] = jnp.where(valid, d, NEG_INF).astype(dis_ref.dtype)


def forward_and_mem(rep, params, *, block_b=512, out_dtype=jnp.float32):
    B, H = rep.shape
    w_cat, col_inv, C, Cp = params["w_cat"], params["col_inv"], params["C"], params["Cp"]
    tb = _batch_tile(B, block_b)
    logits_p, dis_p = pl.pallas_call(
        functools.partial(_fused_kernel, n_valid=C),
        out_shape=(jax.ShapeDtypeStruct((B, Cp), out_dtype),
                   jax.ShapeDtypeStruct((B, Cp), out_dtype)),
        grid=(pl.cdiv(B, tb),),
        in_specs=[
            pl.BlockSpec((tb, H), lambda i: (i, 0)),
            pl.BlockSpec((2 * Cp, H), lambda i: (0, 0)),
            pl.BlockSpec((1, Cp), lambda i: (0, 0)),
        ],
        out_specs=(pl.BlockSpec((tb, Cp), lambda i: (i, 0)),
                   pl.BlockSpec((tb, Cp), lambda i: (i, 0))),
        compiler_params=_CPARAMS,
    )(rep, w_cat, col_inv)
    return logits_p, dis_p, rep


# ----------------------------------------------------------------------------
# Kernel 4: contrastive_forward — con_fc2(gelu(con_fc1(rep)))
# GELU uses the tanh approximation (EUP slot) instead of exact erf (VALU
# polynomial); intermediate cast to bf16 for the second matmul.
# ----------------------------------------------------------------------------
def _contrastive_kernel(rep_ref, w1_ref, b1_ref, w2_ref, b2_ref, out_ref):
    h = lax.dot_general(
        rep_ref[...], w1_ref[...],
        dimension_numbers=(((1,), (1,)), ((), ())),
        preferred_element_type=jnp.float32) + b1_ref[...]
    h = jax.nn.gelu(h, approximate=True)                  # tanh GELU -> EUP
    o = lax.dot_general(
        h.astype(jnp.bfloat16), w2_ref[...],
        dimension_numbers=(((1,), (1,)), ((), ())),
        preferred_element_type=jnp.float32) + b2_ref[...]
    out_ref[...] = o.astype(out_ref.dtype)


def contrastive_forward(rep, params, *, block_b=512, out_dtype=jnp.float32):
    B, H = rep.shape
    w1, b1, w2, b2 = params["w1"], params["b1"], params["w2"], params["b2"]
    Hp = w2.shape[0]
    tb = _batch_tile(B, block_b)
    return pl.pallas_call(
        _contrastive_kernel,
        out_shape=jax.ShapeDtypeStruct((B, Hp), out_dtype),
        grid=(pl.cdiv(B, tb),),
        in_specs=[
            pl.BlockSpec((tb, H), lambda i: (i, 0)),
            pl.BlockSpec((H, H), lambda i: (0, 0)),
            pl.BlockSpec((1, H), lambda i: (0, 0)),
            pl.BlockSpec((Hp, H), lambda i: (0, 0)),
            pl.BlockSpec((1, Hp), lambda i: (0, 0)),
        ],
        out_specs=pl.BlockSpec((tb, Hp), lambda i: (i, 0)),
        compiler_params=_CPARAMS,
    )(rep, w1, b1, w2, b2)


# ----------------------------------------------------------------------------
# Pure-JAX f32 references (match torch eval semantics)
# ----------------------------------------------------------------------------
def _ref_forward(rep, w_fc):
    return rep @ w_fc.T, rep


def _ref_mem(rep, protos):
    rn = rep / jnp.linalg.norm(rep, axis=1, keepdims=True)
    pn = protos / jnp.linalg.norm(protos, axis=1, keepdims=True)
    return rn @ pn.T


def _ref_contrastive(rep, w1, b1, w2, b2):
    h = jax.nn.gelu(rep @ w1.T + b1, approximate=False)   # nn.GELU() default (erf)
    return h @ w2.T + b2


if __name__ == "__main__":
    key = jax.random.PRNGKey(0)
    # B not a multiple of the tile and > 8 -> exercises grid=2 + partial tile.
    B, H, C = 20, 32, 16                                   # batch, hidden, num_class

    ks = iter(jax.random.split(key, 8))
    rep_f32 = jax.random.normal(next(ks), (B, H), dtype=jnp.float32)       # encoder output
    w_fc = jax.random.normal(next(ks), (C, H), dtype=jnp.float32) * 0.1    # fc (no bias)
    protos = jax.random.normal(next(ks), (C, H), dtype=jnp.float32)        # prototypes
    w1 = jax.random.normal(next(ks), (H, H), dtype=jnp.float32) * 0.1      # con_fc1 weight
    b1 = jax.random.normal(next(ks), (1, H), dtype=jnp.float32) * 0.1      # con_fc1 bias
    b2h = H // 2
    w2 = jax.random.normal(next(ks), (b2h, H), dtype=jnp.float32) * 0.1    # con_fc2 weight
    b2 = jax.random.normal(next(ks), (1, b2h), dtype=jnp.float32) * 0.1    # con_fc2 bias

    # Encoder emits bf16 at inference; kernels consume bf16 rep directly.
    rep_bf = rep_f32.astype(jnp.bfloat16)
    rep32 = rep_bf.astype(jnp.float32)                     # reference sees same input

    ref_logits, _ = _ref_forward(rep32, w_fc)
    ref_dis = _ref_mem(rep32, protos)
    ref_cl = _ref_contrastive(rep32, w1, b1, w2, b2)

    # bf16 MXU operands + tanh GELU -> loosened tolerance vs f32/erf reference.
    tol = dict(atol=3e-2, rtol=3e-2)

    # One-time parameter prep (hoisted out of the per-call path).
    fwd_p = prep_forward(w_fc)
    mem_p = prep_mem(protos)
    fused_p = prep_fused(w_fc, protos)
    con_p = prep_contrastive(w1, b1, w2, b2)

    # forward (standalone)
    logits_pad, rep_out = forward(rep_bf, fwd_p)
    jax.block_until_ready(logits_pad)
    assert jnp.allclose(logits_pad[:, :C], ref_logits, **tol)
    assert bool(jnp.all(logits_pad[:, C:] < -1e29))        # padded cols masked
    assert jnp.allclose(rep_out.astype(jnp.float32), rep32)

    # mem_forward (standalone)
    dis_pad = mem_forward(rep_bf, mem_p)
    jax.block_until_ready(dis_pad)
    assert jnp.allclose(dis_pad[:, :C], ref_dis, **tol)
    assert bool(jnp.all(dis_pad[:, C:] < -1e29))

    # fused logits + cosine head (preferred single launch when both needed)
    flogits, fdis, _ = forward_and_mem(rep_bf, fused_p)
    jax.block_until_ready(fdis)
    assert jnp.allclose(flogits[:, :C], ref_logits, **tol)
    assert jnp.allclose(fdis[:, :C], ref_dis, **tol)
    assert bool(jnp.all(flogits[:, C:] < -1e29))
    assert bool(jnp.all(fdis[:, C:] < -1e29))

    # contrastive_forward
    cl_pad = contrastive_forward(rep_bf, con_p)
    jax.block_until_ready(cl_pad)
    assert jnp.allclose(cl_pad[:, :b2h], ref_cl, **tol)

    print("KERNEL_OK")
</pallas_src>

<mosaic_0001>
module attributes {stable_mosaic.version = 11 : i64} {
  func.func @_forward_kernel(%arg0: i32, %arg1: memref<16x32xbf16, #tpu.memory_space<vmem>>, %arg2: memref<128x32xbf16, #tpu.memory_space<vmem>>, %arg3: memref<16x128xf32, #tpu.memory_space<vmem>>) attributes {dimension_semantics = [#tpu.dimension_semantics<parallel>], iteration_bounds = array<i64: 2>, scalar_prefetch = 0 : i64, scratch_operands = 0 : i64, tpu.core_type = #tpu.core_type<tc>, window_params = [{transform_indices = @transform_0, window_bounds = array<i64: 16, 32>}, {pipeline_mode = #tpu.pipeline_mode<synchronous>, transform_indices = @transform_1, window_bounds = array<i64: 128, 32>}, {transform_indices = @transform_2, window_bounds = array<i64: 16, 128>}]} {
    %c0 = arith.constant 0 : index
    %c0_0 = arith.constant 0 : index
    %0 = vector.load %arg1[%c0, %c0_0] : memref<16x32xbf16, #tpu.memory_space<vmem>>, vector<16x32xbf16>
    %c0_1 = arith.constant 0 : index
    %c0_2 = arith.constant 0 : index
    %1 = vector.load %arg2[%c0_1, %c0_2] : memref<128x32xbf16, #tpu.memory_space<vmem>>, vector<128x32xbf16>
    %cst = arith.constant dense<0.000000e+00> : vector<16x128xf32>
    %2 = tpu.matmul %0, %1, %cst {dimension_numbers = #tpu.dot_dimension_numbers<[1], [1], [0], [0], [0, 0, 1, 0], [], []>} : vector<16x32xbf16>, vector<128x32xbf16>, vector<16x128xf32> -> vector<16x128xf32>
    %3 = tpu.iota {dimensions = array<i32: 1>} : vector<16x128xi32>
    %c16_i32 = arith.constant 16 : i32
    %4 = vector.broadcast %c16_i32 : i32 to vector<16x128xi32>
    %5 = arith.cmpi slt, %3, %4 : vector<16x128xi32>
    %cst_3 = arith.constant -1.000000e+30 : f32
    %6 = vector.broadcast %cst_3 : f32 to vector<16x128xf32>
    %7 = arith.select %5, %2, %6 : vector<16x128xi1>, vector<16x128xf32>
    %c0_4 = arith.constant 0 : index
    %c0_5 = arith.constant 0 : index
    %8 = vector.load %arg3[%c0_4, %c0_5] : memref<16x128xf32, #tpu.memory_space<vmem>>, vector<16x128xf32>
    tpu.vector_store %arg3[%c0_4, %c0_5], %7 {strides = array<i32>} : memref<16x128xf32, #tpu.memory_space<vmem>>, vector<16x128xf32>,
    return
  }
  func.func @transform_0(%arg0: i32) -> (i32, i32) {
    %c0_i32 = arith.constant 0 : i32
    %c0_i32_0 = arith.constant 0 : i32
    return %arg0, %c0_i32 : i32, i32
  }
  func.func @transform_1(%arg0: i32) -> (i32, i32) {
    %c0_i32 = arith.constant 0 : i32
    %c0_i32_0 = arith.constant 0 : i32
    %c0_i32_1 = arith.constant 0 : i32
    return %c0_i32, %c0_i32_0 : i32, i32
  }
  func.func @transform_2(%arg0: i32) -> (i32, i32) {
    %c0_i32 = arith.constant 0 : i32
    %c0_i32_0 = arith.constant 0 : i32
    return %arg0, %c0_i32 : i32, i32
  }
}

</mosaic_0001>

<llo_original>
// kernel: tpu_custom_call.1
$region0: #{tpu_custom_call.1}
  #allocation0 [shape = 'u32[]', space=smem, size = 0x4, offset = 0x4, fixed_abs, tag = 'smem constant byte address 0x4 - core index']
  #allocation1 [shape = 'u32[72,128]{1,0:T(1,128)}', space=vmem, size = 0x9000, scoped, tag = 'internal scratch']
  %s0 = inlined_call_operand.vmem [shape: bf16[20,32], index: 0, kind: input, shape index: {}]
  %s1 = inlined_call_operand.vmem [shape: bf16[128,32], index: 1, kind: input, shape index: {}]
  %s2 = inlined_call_operand.hbm [shape: f32[20,128], index: 2, kind: output, shape index: {}]
  %s3 = sld [smem:[#allocation0]]
  $region41: #{tpu_custom_call.1} parent=0
    _
  %s5 = ssub.s32 1, %s3
  %s6 = scalar_select 0, %s5, %s3
  $region1: #{tpu_custom_call.1} parent=0
    #allocation2 [shape = 'u8[16384]{0}', space=vmem, size = 0x4000, scoped, tag = 'output window, operand 0']
    #allocation3 [shape = 's32[2]{0}', space=sflag, size = 0x8, scoped, tag = 'scoped memory for tpu_custom_call.1']
    %7 = vsyncpa [#allocation3], 0
    %s8 = scalar_lea.sflag [#allocation3], 1
    %9 = vsyncpa %s8, 0
    loop: start=0, step=1, limit=4
    $region2: #{tpu_custom_call.1} parent=1 // loop_pre_header
      _
    $region3: #{tpu_custom_call.1} parent=1 // loop_header
      %s11 = sphi 0, %s15
      %p12 = scmp.ge.s32.totalorder %s11, 4
      %s21 = sphi 0, %s23
      %s24 = sphi 0, %s21
      %s25 = sphi 0, %s24
      %s41 = sphi 0, %s25
      %s45 = sphi 0, %s45
      %s47 = sphi 0, %s45
      %s48 = sphi 0, %s47
      %s62 = sphi 0, %s48
      %s68 = sphi 0, %s70
      %s71 = sphi 0, %s68
      %s72 = sphi 0, %s71
      %s88 = sphi 0, %s72
    $region4: #{tpu_custom_call.1} parent=1 // loop_header_branch
      %14 = sbr.rel (%p12) target = $region8
    $region5: #{tpu_custom_call.1} parent=1 // loop_body
      %s16 = ssub.s32 %s11, 1
      %s17 = ssub.s32 %s11, 2
      %s18 = sadd.s32 %s11, 1
      %s19 = ssub.s32 %s11, %s18
      %p20 = scmp.eq.s32.totalorder %s19, 0
      %s22 = sadd.s32 %s21, 1
      %s23 = scalar_select %p20, %s21, %s22
      %p26 = pneg %p20
      %p27 = scmp.eq.s32.totalorder %s11, 1
      %p28 = por %p26, %p27
      %p29 = scmp.ne.s32.totalorder %s21, %s24
      %p30 = scmp.eq.s32.totalorder %s11, 0
      %p31 = por %p29, %p30
      %p32 = scmp.ne.s32.totalorder %s21, %s24
      %p33 = scmp.eq.s32.totalorder %s16, 1
      %p34 = por %p32, %p33
      %p35 = scmp.ne.s32.totalorder %s24, %s25
      %p36 = scmp.eq.s32.totalorder %s16, 0
      %p37 = por %p35, %p36
      %p38 = scmp.ne.s32.totalorder %s24, %s25
      %p39 = scmp.eq.s32.totalorder %s17, 1
      %p40 = por %p38, %p39
      %p42 = scmp.ne.s32.totalorder %s25, %s41
      %p43 = scmp.eq.s32.totalorder %s17, 0
      %p44 = por %p42, %p43
      %s46 = sadd.s32 %s45, 1
      %p49 = scmp.eq.s32.totalorder %s11, 1
      %p50 = scmp.ne.s32.totalorder %s45, %s47
      %p51 = scmp.eq.s32.totalorder %s11, 0
      %p52 = por %p50, %p51
      %p53 = scmp.ne.s32.totalorder %s45, %s47
      %p54 = scmp.eq.s32.totalorder %s16, 1
      %p55 = por %p53, %p54
      %p56 = scmp.ne.s32.totalorder %s47, %s48
      %p57 = scmp.eq.s32.totalorder %s16, 0
      %p58 = por %p56, %p57
      %p59 = scmp.ne.s32.totalorder %s47, %s48
      %p60 = scmp.eq.s32.totalorder %s17, 1
      %p61 = por %p59, %p60
      %p63 = scmp.ne.s32.totalorder %s48, %s62
      %p64 = scmp.eq.s32.totalorder %s17, 0
      %p65 = por %p63, %p64
      %s66 = ssub.s32 %s11, %s18
      %p67 = scmp.eq.s32.totalorder %s66, 0
      %s69 = sadd.s32 %s68, 1
      %s70 = scalar_select %p67, %s68, %s69
      %p73 = pneg %p67
      %p74 = scmp.eq.s32.totalorder %s11, 1
      %p75 = por %p73, %p74
      %p76 = scmp.ne.s32.totalorder %s68, %s71
      %p77 = scmp.eq.s32.totalorder %s11, 0
      %p78 = por %p76, %p77
      %p79 = scmp.ne.s32.totalorder %s68, %s71
      %p80 = scmp.eq.s32.totalorder %s16, 1
      %p81 = por %p79, %p80
      %p82 = scmp.ne.s32.totalorder %s71, %s72
      %p83 = scmp.eq.s32.totalorder %s16, 0
      %p84 = por %p82, %p83
      %p85 = scmp.ne.s32.totalorder %s71, %s72
      %p86 = scmp.eq.s32.totalorder %s17, 1
      %p87 = por %p85, %p86
      %p89 = scmp.ne.s32.totalorder %s72, %s88
      %p90 = scmp.eq.s32.totalorder %s17, 0
      %p91 = por %p89, %p90
      %p92 = scmp.le.s32.totalorder 1, %s11
      %p93 = scmp.lt.s32.totalorder %s11, 3
      %p94 = pnand %p92, %p93
      %p95 = pneg %p94
      // Predicated region
      $region9: #{tpu_custom_call.1} parent=5 // pred_check
        _
      $region10: #{tpu_custom_call.1} parent=5 // pred_check_branch
        %97 = sbr.rel (%p94) target = $region12
      $region11: #{tpu_custom_call.1} parent=5 // pred_region
        %s98 = ssub.s32 %s11, 1
        // Predicated region
        $region13: #{tpu_custom_call.1} parent=11 // pred_check
          %p99 = pneg %p58
        $region14: #{tpu_custom_call.1} parent=11 // pred_check_branch
          %101 = sbr.rel (%p99) target = $region16
        $region15: #{tpu_custom_call.1} parent=11 // pred_region
          _
        $region16: #{tpu_custom_call.1} parent=11 // pred_fallthru
          _
      $region12: #{tpu_custom_call.1} parent=5 // pred_fallthru
        _
      %p102 = scmp.lt.s32.totalorder %s11, 2
      // Predicated region
      $region17: #{tpu_custom_call.1} parent=5 // pred_check
        %p103 = pneg %p102
      $region18: #{tpu_custom_call.1} parent=5 // pred_check_branch
        %105 = sbr.rel (%p103) target = $region20
      $region19: #{tpu_custom_call.1} parent=5 // pred_region
        // Predicated region
        $region21: #{tpu_custom_call.1} parent=19 // pred_check
          %p106 = pneg %p31
        $region22: #{tpu_custom_call.1} parent=19 // pred_check_branch
          %108 = sbr.rel (%p106) target = $region24
        $region23: #{tpu_custom_call.1} parent=19 // pred_region
          %s109 = smul.u32 2, %s11
          %s110 = ssub.s32 3, %s109
          %p111 = scmp.lt.s32.totalorder %s110, 2
          %s112 = scalar_select %p111, %s110, 2
          %s113 = smul.u32 4, %s112
          %p114 = scmp.lt.s32.totalorder %s109, 2
          %s115 = scalar_select %p114, %s109, 2
          %s116 = smul.addr %s115, 4
          %s117 = scalar_lea.vmem %s0, %s116
          %s118 = smul.u32 2, %s11
          %s119 = ssub.s32 3, %s118
          %p120 = scmp.lt.s32.totalorder %s119, 2
          %s121 = scalar_select %p120, %s119, 2
          %s122 = smul.u32 4, %s121
        $region24: #{tpu_custom_call.1} parent=19 // pred_fallthru
          _
      $region20: #{tpu_custom_call.1} parent=5 // pred_fallthru
        _
      %p123 = scmp.le.s32.totalorder 1, %s11
      %p124 = scmp.lt.s32.totalorder %s11, 3
      %p125 = pnand %p123, %p124
      %p126 = pneg %p125
      // Predicated region
      $region25: #{tpu_custom_call.1} parent=5 // pred_check
        _
      $region26: #{tpu_custom_call.1} parent=5 // pred_check_branch
        %128 = sbr.rel (%p125) target = $region28
      $region27: #{tpu_custom_call.1} parent=5 // pred_region
        %s129 = ssub.s32 %s11, 1
        %s130 = smul.u32 2, %s16
        %s131 = ssub.s32 3, %s130
        %p132 = scmp.lt.s32.totalorder %s131, 2
        %s133 = scalar_select %p132, %s131, 2
        %s134 = smul.u32 4, %s133
        %p135 = scmp.lt.s32.totalorder %s130, 2
        %s136 = scalar_select %p135, %s130, 2
        %s137 = smul.addr %s136, 4
        %s138 = scalar_lea.vmem %s0, %s137
        %p139 = pneg %p37
        %p140 = pneg %p34
        %p141 = pneg %p58
        %p142 = pneg %p55
        %p143 = pneg %p84
        %p144 = pneg %p81
        %s145 = sand.u32 %s71, 1
        %s146 = scalar_lea.sflag [#allocation3], %s145
        %s147 = sand.u32 %s71, 1
        %s148 = smul.addr %s147, 16
        %s149 = scalar_lea.vmem [#allocation2], %s148
        %s150 = smul.u32 2, %s16
        %s151 = ssub.s32 3, %s150
        %p152 = scmp.lt.s32.totalorder %s151, 2
        %s153 = scalar_select %p152, %s151, 2
        %s154 = smul.u32 4, %s153
        %p155 = scmp.lt.s32.totalorder %s150, 2
        %s156 = scalar_select %p155, %s150, 2
        %s157 = smul.addr %s156, 4
        %s158 = scalar_lea.vmem %s0, %s157
        %s159 = smul.u32 2, %s16
        %s160 = ssub.s32 3, %s159
        %p161 = scmp.lt.s32.totalorder %s160, 2
        %s162 = scalar_select %p161, %s160, 2
        %s163 = smul.u32 4, %s162
        %s164 = smul.u32 2, %s16
        %s165 = ssub.s32 3, %s164
        %p166 = scmp.lt.s32.totalorder %s165, 2
        %s167 = scalar_select %p166, %s165, 2
        %s168 = smul.u32 8, %s167
        %v169 = vld [vmem:[%s158] sm:$0xf]
        %v170 = vld [vmem:[%s158 + $0x4] sm:$0xf]
        %v171 = vld [vmem:[%s1] sm:$0xf]
        %v172 = vld [vmem:[%s1 + $0x4] sm:$0xf]
        %v173 = vld [vmem:[%s1 + $0x8] sm:$0xf]
        %v174 = vld [vmem:[%s1 + $0xc] sm:$0xf]
        %v175 = vld [vmem:[%s1 + $0x10] sm:$0xf]
        %v176 = vld [vmem:[%s1 + $0x14] sm:$0xf]
        %v177 = vld [vmem:[%s1 + $0x18] sm:$0xf]
        %v178 = vld [vmem:[%s1 + $0x1c] sm:$0xf]
        %v179 = vld [vmem:[%s1 + $0x20] sm:$0xf]
        %v180 = vld [vmem:[%s1 + $0x24] sm:$0xf]
        %v181 = vld [vmem:[%s1 + $0x28] sm:$0xf]
        %v182 = vld [vmem:[%s1 + $0x2c] sm:$0xf]
        %v183 = vld [vmem:[%s1 + $0x30] sm:$0xf]
        %v184 = vld [vmem:[%s1 + $0x34] sm:$0xf]
        %v185 = vld [vmem:[%s1 + $0x38] sm:$0xf]
        %v186 = vld [vmem:[%s1 + $0x3c] sm:$0xf]
        %v189 = vunpack.c.l.b16 %v169
        %v190 = vunpack.c.l.b16 %v170
        %v191 = vpack.c.b16 %v190, %v189
        %v208 = vunpack.c.l.b16 %v171
        %v209 = vunpack.c.l.b16 %v172
        %v210 = vunpack.c.l.b16 %v173
        %v211 = vunpack.c.l.b16 %v174
        %v212 = vunpack.c.l.b16 %v175
        %v213 = vunpack.c.l.b16 %v176
        %v214 = vunpack.c.l.b16 %v177
        %v215 = vunpack.c.l.b16 %v178
        %v216 = vunpack.c.l.b16 %v179
        %v217 = vunpack.c.l.b16 %v180
        %v218 = vunpack.c.l.b16 %v181
        %v219 = vunpack.c.l.b16 %v182
        %v220 = vunpack.c.l.b16 %v183
        %v221 = vunpack.c.l.b16 %v184
        %v222 = vunpack.c.l.b16 %v185
        %v223 = vunpack.c.l.b16 %v186
        %v224 = vpack.c.b16 %v209, %v208
        %v225 = vpack.c.b16 %v211, %v210
        %v226 = vpack.c.b16 %v213, %v212
        %v227 = vpack.c.b16 %v215, %v214
        %v228 = vpack.c.b16 %v217, %v216
        %v229 = vpack.c.b16 %v219, %v218
        %v230 = vpack.c.b16 %v221, %v220
        %v231 = vpack.c.b16 %v223, %v222
        %vm232 = vcmask 261120
        %v234 = vsel %vm232, %v191, 0
        %v237 = vsel %vm232, %v224, 0
        %v240 = vsel %vm232, %v225, 0
        %v243 = vsel %vm232, %v226, 0
        %v246 = vsel %vm232, %v227, 0
        %v249 = vsel %vm232, %v228, 0
        %v252 = vsel %vm232, %v229, 0
        %v255 = vsel %vm232, %v230, 0
        %v258 = vsel %vm232, %v231, 0
        %260 = vmatpush.bf16.xpose.msra.mxu0 %v258
        %261 = vmatpush.bf16.xpose.msra.mxu0 %v255
        %262 = vmatpush.bf16.xpose.msra.mxu0 %v252
        %263 = vmatpush.bf16.xpose.msra.mxu0 %v249
        %264 = vmatpush.bf16.xpose.msra.mxu0 %v246
        %265 = vmatpush.bf16.xpose.msra.mxu0 %v243
        %266 = vmatpush.bf16.xpose.msra.mxu0 %v240
        %267 = vmatpush.bf16.xpose.msra.mxu0 %v237
        %268 = vmatmul.bf16.gmra.mxu0 %v234
        %v269 = vpop.f32.mrf.mxu0
        %v270 = vadd.f32 0.0, %v269
        %v271 = vpop.f32.mrf.mxu0
        %v272 = vadd.f32 0.0, %v271
        %273 = vdwg.mxu0
        %v274 = vlaneseq
        %v275 = vand.u32 %v274, 127
        %vm276 = vcmp.lt.s32.totalorder %v275, 16
        %v277 = vsel %vm276, %v270, -1e+30
        %v278 = vsel %vm276, %v272, -1e+30
        %279 = vst [vmem:[%s149] sm:$0xff] %v277
        %280 = vst [vmem:[%s149 + $0x8] sm:$0xff] %v278
        %s281 = sand.u32 %s71, 1
        %s282 = scalar_lea.sflag [#allocation3], %s281
        %s283 = sand.u32 %s71, 1
        %s284 = smul.addr %s283, 16
        %s285 = scalar_lea.vmem [#allocation2], %s284
        // Predicated region
        $region29: #{tpu_custom_call.1} parent=27 // pred_check
          %p286 = pneg %p81
        $region30: #{tpu_custom_call.1} parent=27 // pred_check_branch
          %288 = sbr.rel (%p286) target = $region32
        $region31: #{tpu_custom_call.1} parent=27 // pred_region
          %s289 = smul.u32 2, %s16
          %s290 = ssub.s32 3, %s289
          %p291 = scmp.lt.s32.totalorder %s290, 2
          %s292 = scalar_select %p291, %s290, 2
          %s293 = smul.u32 8, %s292
          %s294 = ssub.s32 16, %s293
          %s295 = sshll.u32 %s294, 4
          %296 = vsyncadd %s282, %s295
          %p297 = scmp.ne.s32.totalorder 0, %s293
          %s298 = smul.addr %s289, 8
          %s299 = scalar_lea.hbm %s2, %s298
          %s300 = smul.u32 8, %s292
          %s301 = sshll.u32 %s285, 4
          %s302 = int_to_ptr.vmem [resolvable:$true] %s301
          %s303 = sshll.u32 %s299, 4
          %s304 = int_to_ptr.hbm [resolvable:$true] %s303
          %s305 = sshll.u32 %s300, 4
          %309 = dma.vmem_to_hbm [thread:$0]  (%p297), %s302, %s305, %s304, %s282, 128, 128, 8
        $region32: #{tpu_custom_call.1} parent=27 // pred_fallthru
          _
      $region28: #{tpu_custom_call.1} parent=5 // pred_fallthru
        _
      %p310 = scmp.le.s32.totalorder 2, %s11
      // Predicated region
      $region33: #{tpu_custom_call.1} parent=5 // pred_check
        %p311 = pneg %p310
      $region34: #{tpu_custom_call.1} parent=5 // pred_check_branch
        %313 = sbr.rel (%p311) target = $region36
      $region35: #{tpu_custom_call.1} parent=5 // pred_region
        %s314 = ssub.s32 %s11, 2
        // Predicated region
        $region37: #{tpu_custom_call.1} parent=35 // pred_check
          %p315 = pneg %p87
        $region38: #{tpu_custom_call.1} parent=35 // pred_check_branch
          %317 = sbr.rel (%p315) target = $region40
        $region39: #{tpu_custom_call.1} parent=35 // pred_region
          %s318 = sand.u32 %s72, 1
          %s319 = scalar_lea.sflag [#allocation3], %s318
          %s320 = sand.u32 %s72, 1
          %s321 = smul.addr %s320, 16
          %s322 = scalar_lea.vmem [#allocation2], %s321
          %324 = dma.done %s319, 256
        $region40: #{tpu_custom_call.1} parent=35 // pred_fallthru
          _
      $region36: #{tpu_custom_call.1} parent=5 // pred_fallthru
        _
    $region6: #{tpu_custom_call.1} parent=1 // loop_footer
      %s15 = sadd.s32 1, %s11
    $region7: #{tpu_custom_call.1} parent=1 // loop_footer_branch
      %10 = sbr.rel target = $region3
    $region8: #{tpu_custom_call.1} parent=1 // loop_exit
      _
    %325 = vsyncpa [#allocation3], 1
    %s326 = scalar_lea.sflag [#allocation3], 1
    %327 = vsyncpa %s326, 1

</llo_original>
